<compile_context>
chip_gen: v7x
topology: tpu7x:2x2x1
jax: 0.10.0
libtpu: 0.0.40
codegen_flags: <defaults>
</compile_context>

<pallas_src>
import functools

import jax
import jax.numpy as jnp
from jax.experimental import pallas as pl
from jax.experimental.pallas import tpu as pltpu


def _spec(shape):
    n = len(shape)
    return pl.BlockSpec(shape, lambda i, _n=n: (0,) * _n)


# ----------------------------- Pallas kernels ------------------------------

def depro_image_kernel(d_vis, d_hidden, d_embed,
                       x_ref, w_patch_ref, w_g1_ref, w_g2_ref,
                       w_heads_ref, b_pack_ref, o_ref):
    """Fused image branch: patch-embed -> pool -> UDP MLP -> 2 heads -> L2 norm.

    x_ref:       [B, Np, C*P*P]   flattened patches (bf16)
    w_patch_ref: [C*P*P, d_vis]   patch-embed weight (bf16)
    w_g*_ref:    VisualUDPGenerator meta-net weights (bf16)
    w_heads_ref: [2*d_vis, 2*d_embed] packed heads [[W0,W1],[0,W1]] (bf16)
    b_pack_ref:  [4, 2*d_embed]   rows = [b_patch | b_g1 | b_g2 | b_heads],
                                  each zero-padded to 2*d_embed lanes (f32)
    o_ref:       [B, 2*d_embed]   (head0 | head1), each half L2-normalized.
    """
    bf = jnp.bfloat16
    f32 = jnp.float32

    # In-register slices of the single packed-bias operand.
    b = b_pack_ref[...]
    b_patch = b[0:1, :d_vis]
    b_g1 = b[1:2, :d_hidden]
    b_g2 = b[2:3, :d_vis]
    b_heads = b[3:4, :]

    # mean(x) @ W + b == mean(x @ W + b) exactly for this reduced model (no
    # transformer blocks between patch-embed and pooling): pool the raw
    # patches first -> Np-x fewer MXU FLOPs and no [B*Np, d_vis] token buffer.
    # TODO(synk): real CLIP ViT blocks (MHSA+MLP stacks) between embed and
    # pool are not translated; at that scale tokens must stream over a grid
    # axis with a VMEM accumulator (v7x has only 64 MiB VMEM).
    x = x_ref[...].astype(f32)                                   # [B, Np, Kp]
    pooled_x = jnp.mean(x, axis=1)                               # [B, Kp] sublane reduce

    pooled = (jnp.dot(pooled_x.astype(bf), w_patch_ref[...],
                      preferred_element_type=f32) + b_patch)     # [B, d_vis]

    # VisualUDPGenerator meta-net: 2-layer MLP + ReLU on pooled features.
    h = jnp.maximum(
        jnp.dot(pooled.astype(bf), w_g1_ref[...],
                preferred_element_type=f32) + b_g1, 0.0)
    vp = (jnp.dot(h.astype(bf), w_g2_ref[...],
                  preferred_element_type=f32) + b_g2)            # [B, d_vis]

    # Both projection heads in ONE lane-dense K=N=128 MXU matmul:
    # [pooled | vp] @ [[W0,W1],[0,W1]] = [pooled@W0 | (pooled+vp)@W1].
    lhs = jnp.concatenate([pooled, vp], axis=-1).astype(bf)      # [B, 2*d_vis]
    y = (jnp.dot(lhs, w_heads_ref[...],
                 preferred_element_type=f32) + b_heads)          # [B, 2*d_embed]

    # Per-head L2 norm: one full-width square/reduce; second half by
    # subtraction.  No eps, matching PyTorch x / x.norm() (zero row -> NaN).
    lane = jax.lax.broadcasted_iota(jnp.int32, y.shape, 1)
    left = lane < d_embed
    sq = y * y
    n_tot = jnp.sum(sq, axis=-1, keepdims=True)
    n0 = jnp.sum(jnp.where(left, sq, 0.0), axis=-1, keepdims=True)
    scale = jnp.where(left, jax.lax.rsqrt(n0), jax.lax.rsqrt(n_tot - n0))
    o_ref[...] = (y * scale).astype(o_ref.dtype)


def depro_text_kernel(d_embed, fixed_ref, ctx_ref, w_ref, b_ref, o_ref):
    """Fused text branch: l2norm(fixed) | l2norm(proj(mean(ctx))).

    fixed_ref: [C, d_embed]       frozen CLIP text features
    ctx_ref:   [C, n_ctx, d_text] learned context tokens
    o_ref:     [C, 2*d_embed]     (normalized fixed | normalized learned)
    """
    bf = jnp.bfloat16
    fixed = fixed_ref[...]                                        # [C, d_embed]
    pooled = jnp.mean(ctx_ref[...], axis=1)                       # [C, d_text]
    y = (jnp.dot(pooled.astype(bf), w_ref[...],
                 preferred_element_type=jnp.float32) + b_ref[...])  # [C, d_embed]

    out = jnp.concatenate([fixed, y], axis=-1)                    # [C, 2*d_embed]
    lane = jax.lax.broadcasted_iota(jnp.int32, out.shape, 1)
    left = lane < d_embed
    sq = out * out
    n_tot = jnp.sum(sq, axis=-1, keepdims=True)
    n0 = jnp.sum(jnp.where(left, sq, 0.0), axis=-1, keepdims=True)
    scale = jnp.where(left, jax.lax.rsqrt(n0), jax.lax.rsqrt(n_tot - n0))
    o_ref[...] = (out * scale).astype(o_ref.dtype)


# --------------------------- pallas_call wrappers ---------------------------

# NOTE: at toy shapes a single grid step with whole-array blocks is optimal
# (per-step overhead dominates).  When scaling to real CLIP sizes: tile the
# batch axis with an (8,128)-aligned row block marked "parallel" (2 TCs on
# v7x), stream tokens over an "arbitrary" axis with a VMEM accumulator, use
# 256-wide MXU tiles on v6e/v7x, and set vmem_limit_bytes with headroom under
# v7x's 64 MiB VMEM.
_COMPILER_PARAMS = pltpu.CompilerParams(dimension_semantics=("arbitrary",))


def depro_image_features(prep, patches):
    B = patches.shape[0]
    d_embed = prep['d_embed']
    kernel = functools.partial(depro_image_kernel, prep['d_vis'],
                               prep['d_hidden'], d_embed)
    out = pl.pallas_call(
        kernel,
        out_shape=jax.ShapeDtypeStruct((B, 2 * d_embed), jnp.float32),
        grid=(1,),
        in_specs=[_spec(patches.shape),
                  _spec(prep['w_patch'].shape),
                  _spec(prep['w_g1'].shape),
                  _spec(prep['w_g2'].shape),
                  _spec(prep['w_heads'].shape),
                  _spec(prep['b_pack'].shape)],
        out_specs=_spec((B, 2 * d_embed)),
        compiler_params=_COMPILER_PARAMS,
    )(patches, prep['w_patch'], prep['w_g1'], prep['w_g2'],
      prep['w_heads'], prep['b_pack'])
    return out[:, :d_embed], out[:, d_embed:]


def depro_text_features(prep):
    C, d_embed = prep['text_fixed'].shape
    kernel = functools.partial(depro_text_kernel, d_embed)
    out = pl.pallas_call(
        kernel,
        out_shape=jax.ShapeDtypeStruct((C, 2 * d_embed), jnp.float32),
        grid=(1,),
        in_specs=[_spec(prep['text_fixed'].shape),
                  _spec(prep['text_ctx'].shape),
                  _spec(prep['w_text'].shape),
                  _spec(prep['b_text'].shape)],
        out_specs=_spec((C, 2 * d_embed)),
        compiler_params=_COMPILER_PARAMS,
    )(prep['text_fixed'], prep['text_ctx'], prep['w_text'], prep['b_text'])
    return out[:, :d_embed], out[:, d_embed:]


# ------------------------------- parameters --------------------------------

def init_params(key, *, num_classes=4, num_domains=2, img_channels=3, patch=4,
                d_vis=64, d_text=64, d_embed=64, n_ctx=8, d_hidden=32):
    ks = jax.random.split(key, 8)
    s = lambda k, shape, scale=0.02: scale * jax.random.normal(k, shape, jnp.float32)
    patch_dim = img_channels * patch * patch
    return dict(
        patch=patch,
        num_domains=num_domains,
        # FixedEmbeddings (frozen CLIP text features), [C, d_embed]
        text_fixed=s(ks[0], (num_classes, d_embed), 1.0),
        # DomainPromptLearner learned context tokens, [C, n_ctx, d_text]
        text_ctx=s(ks[1], (num_classes, n_ctx, d_text), 1.0),
        w_text=s(ks[2], (d_text, d_embed)),
        b_text=jnp.zeros((1, d_embed), jnp.float32),
        # PromptedViT patch-embedding conv stem as a matmul over flat patches
        w_patch=s(ks[3], (patch_dim, d_vis)),
        b_patch=jnp.zeros((1, d_vis), jnp.float32),
        # VisualUDPGenerator meta-net
        w_g1=s(ks[4], (d_vis, d_hidden)),
        b_g1=jnp.zeros((1, d_hidden), jnp.float32),
        w_g2=s(ks[5], (d_hidden, d_vis)),
        b_g2=jnp.zeros((1, d_vis), jnp.float32),
        # two ViT output heads -> list of image features
        w_proj0=s(ks[6], (d_vis, d_embed)),
        b_proj0=jnp.zeros((1, d_embed), jnp.float32),
        w_proj1=s(ks[7], (d_vis, d_embed)),
        b_proj1=jnp.zeros((1, d_embed), jnp.float32),
    )


def prepare_params(params):
    """One-time weight packing / bf16 casting (removes per-forward XLA glue)."""
    bf = jnp.bfloat16
    d_vis = params['w_patch'].shape[1]
    d_hidden = params['w_g1'].shape[1]
    d_embed = params['w_proj0'].shape[1]

    # [[W0, W1], [0, W1]] : one 128x128 matmul serves both heads
    # ([pooled | vp] @ W = [pooled@W0 | (pooled+vp)@W1]).
    w_heads = jnp.concatenate(
        [jnp.concatenate([params['w_proj0'], params['w_proj1']], axis=1),
         jnp.concatenate([jnp.zeros_like(params['w_proj1']),
                          params['w_proj1']], axis=1)],
        axis=0).astype(bf)                                        # [2*d_vis, 2*d_embed]

    # All four biases packed into one [4, 2*d_embed] operand, zero-padded to
    # the lane width; sliced in-register inside the kernel.
    width = 2 * d_embed
    pad = lambda v: jnp.pad(v, ((0, 0), (0, width - v.shape[1])))
    b_pack = jnp.concatenate(
        [pad(params['b_patch']), pad(params['b_g1']), pad(params['b_g2']),
         jnp.concatenate([params['b_proj0'], params['b_proj1']], axis=1)],
        axis=0).astype(jnp.float32)                               # [4, 2*d_embed]

    return dict(
        patch=params['patch'],
        d_vis=d_vis, d_hidden=d_hidden, d_embed=d_embed,
        w_patch=params['w_patch'].astype(bf),
        w_g1=params['w_g1'].astype(bf),
        w_g2=params['w_g2'].astype(bf),
        w_heads=w_heads,
        b_pack=b_pack,
        text_fixed=params['text_fixed'],
        text_ctx=params['text_ctx'],
        w_text=params['w_text'].astype(bf),
        b_text=params['b_text'],
    )


# --------------------------------- forward ---------------------------------

def depro_forward(prep, image, dom_id=0, cls_id=0, text_features=None):
    B, C, H, W = image.shape
    P = prep['patch']

    # ---- patchify (XLA glue), cast to bf16 once so the dominant DMA is
    # half-width; the kernel accumulates in f32.
    # TODO(synk): at real image sizes, fuse this NCHW patchify into the kernel
    # via a BlockSpec index_map over (B, H/P, W/P) tiles instead of
    # materializing the transposed patch tensor in HBM.
    x = image.reshape(B, C, H // P, P, W // P, P)
    x = x.transpose(0, 2, 4, 1, 3, 5).reshape(B, (H // P) * (W // P), C * P * P)
    x = x.astype(jnp.bfloat16)

    # ---- fused image branch (patch-embed -> pool -> UDP MLP -> heads -> norm)
    # TODO(synk): the full CLIP ViT transformer blocks (MHSA + MLP stacks) have
    # no clean small-scale Pallas equivalent here; the prompted visual encoder
    # is reduced to patch-embed -> prompt injection -> pooling -> projection.
    img_feat0, img_feat1 = depro_image_features(prep, x)
    image_features = [img_feat0, img_feat1]

    # ---- text branch depends only on params: computed once by the caller and
    # passed in (hoisted out of the per-image forward).  Falls back to an
    # in-line compute if not provided.
    # TODO(synk): the CLIP transformer TextEncoder over tokenized prompts is
    # not translated; the prompt-learner path is reduced to ctx pooling + proj.
    if text_features is None:
        text_features = depro_text_features(prep)
    text_features = list(text_features)

    return image_features, text_features


if __name__ == "__main__":
    key = jax.random.PRNGKey(0)
    pkey, ikey = jax.random.split(key)
    params = init_params(pkey)
    prep = prepare_params(params)                    # one-time packing / bf16 cast

    # Params-only text branch: computed once, reused for every image batch.
    cached_text = depro_text_features(prep)

    image = jax.random.normal(ikey, (2, 3, 16, 16), jnp.float32)  # NCHW like PyTorch
    image_features, text_features = depro_forward(prep, image, dom_id=0, cls_id=0,
                                                  text_features=cached_text)
    for t in list(image_features) + list(text_features):
        jax.block_until_ready(t)
    assert image_features[0].shape == (2, 64) and image_features[1].shape == (2, 64)
    assert text_features[0].shape == (4, 64) and text_features[1].shape == (4, 64)
    print("KERNEL_OK")
</pallas_src>

<mosaic_0001>
module attributes {stable_mosaic.version = 11 : i64} {
  func.func @depro_text_kernel(%arg0: i32, %arg1: memref<4x64xf32, #tpu.memory_space<vmem>>, %arg2: memref<4x8x64xf32, #tpu.memory_space<vmem>>, %arg3: memref<64x64xbf16, #tpu.memory_space<vmem>>, %arg4: memref<1x64xf32, #tpu.memory_space<vmem>>, %arg5: memref<4x128xf32, #tpu.memory_space<vmem>>) attributes {dimension_semantics = [#tpu.dimension_semantics<arbitrary>], iteration_bounds = array<i64: 1>, scalar_prefetch = 0 : i64, scratch_operands = 0 : i64, tpu.core_type = #tpu.core_type<tc>, window_params = [{pipeline_mode = #tpu.pipeline_mode<synchronous>, transform_indices = @transform_0, window_bounds = array<i64: 4, 64>}, {pipeline_mode = #tpu.pipeline_mode<synchronous>, transform_indices = @transform_1, window_bounds = array<i64: 4, 8, 64>}, {pipeline_mode = #tpu.pipeline_mode<synchronous>, transform_indices = @transform_2, window_bounds = array<i64: 64, 64>}, {pipeline_mode = #tpu.pipeline_mode<synchronous>, transform_indices = @transform_3, window_bounds = array<i64: 1, 64>}, {pipeline_mode = #tpu.pipeline_mode<synchronous>, transform_indices = @transform_4, window_bounds = array<i64: 4, 128>}]} {
    %c0 = arith.constant 0 : index
    %c0_0 = arith.constant 0 : index
    %0 = vector.load %arg1[%c0, %c0_0] : memref<4x64xf32, #tpu.memory_space<vmem>>, vector<4x64xf32>
    %c0_1 = arith.constant 0 : index
    %c0_2 = arith.constant 0 : index
    %c0_3 = arith.constant 0 : index
    %1 = vector.load %arg2[%c0_1, %c0_2, %c0_3] : memref<4x8x64xf32, #tpu.memory_space<vmem>>, vector<4x8x64xf32>
    %cst = arith.constant dense<0.000000e+00> : vector<4x64xf32>
    %2 = vector.multi_reduction <add>, %1, %cst [1] : vector<4x8x64xf32> to vector<4x64xf32>
    %cst_4 = arith.constant 8.000000e+00 : f32
    %3 = vector.broadcast %cst_4 : f32 to vector<4x64xf32>
    %4 = arith.divf %2, %3 : vector<4x64xf32>
    %5 = arith.truncf %4 : vector<4x64xf32> to vector<4x64xbf16>
    %c0_5 = arith.constant 0 : index
    %c0_6 = arith.constant 0 : index
    %6 = vector.load %arg3[%c0_5, %c0_6] : memref<64x64xbf16, #tpu.memory_space<vmem>>, vector<64x64xbf16>
    %cst_7 = arith.constant dense<0.000000e+00> : vector<4x64xf32>
    %7 = tpu.matmul %5, %6, %cst_7 {dimension_numbers = #tpu.dot_dimension_numbers<[1], [0], [0], [1], [0, 0, 1, 1], [], []>} : vector<4x64xbf16>, vector<64x64xbf16>, vector<4x64xf32> -> vector<4x64xf32>
    %c0_8 = arith.constant 0 : index
    %c0_9 = arith.constant 0 : index
    %8 = vector.load %arg4[%c0_8, %c0_9] : memref<1x64xf32, #tpu.memory_space<vmem>>, vector<1x64xf32>
    %9 = vector.broadcast %8 : vector<1x64xf32> to vector<4x64xf32>
    %10 = arith.addf %7, %9 : vector<4x64xf32>
    %11 = tpu.concatenate %0, %10 in 1 : vector<4x64xf32>, vector<4x64xf32> -> vector<4x128xf32>
    %12 = tpu.iota {dimensions = array<i32: 1>} : vector<4x128xi32>
    %c64_i32 = arith.constant 64 : i32
    %13 = vector.broadcast %c64_i32 : i32 to vector<4x128xi32>
    %14 = arith.cmpi slt, %12, %13 : vector<4x128xi32>
    %15 = arith.mulf %11, %11 : vector<4x128xf32>
    %cst_10 = arith.constant dense<0.000000e+00> : vector<4xf32>
    %16 = vector.multi_reduction <add>, %15, %cst_10 [1] : vector<4x128xf32> to vector<4xf32>
    %17 = vector.shape_cast %16 : vector<4xf32> to vector<4x1xf32>
    %cst_11 = arith.constant 0.000000e+00 : f32
    %18 = vector.broadcast %cst_11 : f32 to vector<4x128xf32>
    %19 = arith.select %14, %15, %18 : vector<4x128xi1>, vector<4x128xf32>
    %cst_12 = arith.constant dense<0.000000e+00> : vector<4xf32>
    %20 = vector.multi_reduction <add>, %19, %cst_12 [1] : vector<4x128xf32> to vector<4xf32>
    %21 = vector.shape_cast %20 : vector<4xf32> to vector<4x1xf32>
    %22 = math.rsqrt %21 : vector<4x1xf32>
    %23 = arith.subf %17, %21 : vector<4x1xf32>
    %24 = math.rsqrt %23 : vector<4x1xf32>
    %25 = vector.shape_cast %22 : vector<4x1xf32> to vector<4x1xf32>
    %26 = vector.broadcast %25 : vector<4x1xf32> to vector<4x128xf32>
    %27 = vector.shape_cast %24 : vector<4x1xf32> to vector<4x1xf32>
    %28 = vector.broadcast %27 : vector<4x1xf32> to vector<4x128xf32>
    %29 = arith.select %14, %26, %28 : vector<4x128xi1>, vector<4x128xf32>
    %30 = arith.mulf %11, %29 : vector<4x128xf32>
    %c0_13 = arith.constant 0 : index
    %c0_14 = arith.constant 0 : index
    %31 = vector.load %arg5[%c0_13, %c0_14] : memref<4x128xf32, #tpu.memory_space<vmem>>, vector<4x128xf32>
    tpu.vector_store %arg5[%c0_13, %c0_14], %30 {strides = array<i32>} : memref<4x128xf32, #tpu.memory_space<vmem>>, vector<4x128xf32>,
    return
  }
  func.func @transform_0(%arg0: i32) -> (i32, i32) {
    %c0_i32 = arith.constant 0 : i32
    %c0_i32_0 = arith.constant 0 : i32
    %c0_i32_1 = arith.constant 0 : i32
    return %c0_i32, %c0_i32_0 : i32, i32
  }
  func.func @transform_1(%arg0: i32) -> (i32, i32, i32) {
    %c0_i32 = arith.constant 0 : i32
    %c0_i32_0 = arith.constant 0 : i32
    %c0_i32_1 = arith.constant 0 : i32
    %c0_i32_2 = arith.constant 0 : i32
    return %c0_i32, %c0_i32_0, %c0_i32_1 : i32, i32, i32
  }
  func.func @transform_2(%arg0: i32) -> (i32, i32) {
    %c0_i32 = arith.constant 0 : i32
    %c0_i32_0 = arith.constant 0 : i32
    %c0_i32_1 = arith.constant 0 : i32
    return %c0_i32, %c0_i32_0 : i32, i32
  }
  func.func @transform_3(%arg0: i32) -> (i32, i32) {
    %c0_i32 = arith.constant 0 : i32
    %c0_i32_0 = arith.constant 0 : i32
    %c0_i32_1 = arith.constant 0 : i32
    return %c0_i32, %c0_i32_0 : i32, i32
  }
  func.func @transform_4(%arg0: i32) -> (i32, i32) {
    %c0_i32 = arith.constant 0 : i32
    %c0_i32_0 = arith.constant 0 : i32
    %c0_i32_1 = arith.constant 0 : i32
    return %c0_i32, %c0_i32_0 : i32, i32
  }
}

</mosaic_0001>

<llo_original>
// kernel: tpu_custom_call.1
$region0: #{tpu_custom_call.1}
  #allocation0 [shape = 'u32[]', space=smem, size = 0x4, offset = 0x4, fixed_abs, tag = 'smem constant byte address 0x4 - core index']
  #allocation1 [shape = 'u32[144,128]{1,0:T(1,128)}', space=vmem, size = 0x12000, scoped, tag = 'internal scratch']
  %s0 = inlined_call_operand.hbm [shape: f32[4,64], index: 0, kind: input, shape index: {}]
  %s1 = inlined_call_operand.hbm [shape: f32[4,8,64], index: 1, kind: input, shape index: {}]
  %s2 = inlined_call_operand.hbm [shape: bf16[64,64], index: 2, kind: input, shape index: {}]
  %s3 = inlined_call_operand.vmem [shape: f32[1,64], index: 3, kind: input, shape index: {}]
  %s4 = inlined_call_operand.hbm [shape: f32[4,128], index: 4, kind: output, shape index: {}]
  %s5 = sld [smem:[#allocation0]]
  $region38: #{tpu_custom_call.1} parent=0
    _
  %s7 = ssub.s32 1, %s5
  %s8 = scalar_select 0, %s7, %s5
  $region1: #{tpu_custom_call.1} parent=0
    #allocation2 [shape = 'u8[2048]{0}', space=vmem, size = 0x800, scoped, tag = 'input window, operand 0, single buffered']
    #allocation3 [shape = 's32[1]{0}', space=sflag, size = 0x4, scoped, tag = 'scoped memory for tpu_custom_call.1']
    #allocation4 [shape = 's32[1]{0}', space=sflag, size = 0x4, scoped, tag = 'scoped memory for tpu_custom_call.1']
    #allocation5 [shape = 'u8[16384]{0}', space=vmem, size = 0x4000, scoped, tag = 'input window, operand 1, single buffered']
    #allocation6 [shape = 's32[1]{0}', space=sflag, size = 0x4, scoped, tag = 'scoped memory for tpu_custom_call.1']
    #allocation7 [shape = 'u8[16384]{0}', space=vmem, size = 0x4000, scoped, tag = 'input window, operand 2, single buffered']
    #allocation8 [shape = 'u8[2048]{0}', space=vmem, size = 0x800, scoped, tag = 'output window, operand 0, single buffered']
    %9 = vsyncpa [#allocation3], 0
    %10 = vsyncpa [#allocation6], 0
    %11 = vsyncpa [#allocation4], 0
    // Predicated region
    $region2: #{tpu_custom_call.1} parent=1 // pred_check
      _
    $region3: #{tpu_custom_call.1} parent=1 // pred_check_branch
      %13 = sbr.rel (0) target = $region5
    $region4: #{tpu_custom_call.1} parent=1 // pred_region
      %s15 = ssub.s32 64, 64
      %16 = vsyncadd [#allocation3], %s15
      %s18 = sshll.u32 [#allocation2], 4
      %s19 = int_to_ptr.vmem [resolvable:$true] %s18
      %21 = dma.hbm_to_vmem [thread:$0]  %s0, 64, %s19, [#allocation3]
    $region5: #{tpu_custom_call.1} parent=1 // pred_fallthru
      _
    // Predicated region
    $region6: #{tpu_custom_call.1} parent=1 // pred_check
      _
    $region7: #{tpu_custom_call.1} parent=1 // pred_check_branch
      %23 = sbr.rel (0) target = $region9
    $region8: #{tpu_custom_call.1} parent=1 // pred_region
      %s25 = ssub.s32 512, 512
      %26 = vsyncadd [#allocation6], %s25
      %s27 = sshll.u32 [#allocation5], 4
      %s28 = int_to_ptr.vmem [resolvable:$true] %s27
      %33 = dma.hbm_to_vmem [thread:$0]  %s1, 512, %s28, [#allocation6], 128, 128, 8
    $region9: #{tpu_custom_call.1} parent=1 // pred_fallthru
      _
    // Predicated region
    $region10: #{tpu_custom_call.1} parent=1 // pred_check
      _
    $region11: #{tpu_custom_call.1} parent=1 // pred_check_branch
      %35 = sbr.rel (0) target = $region13
    $region12: #{tpu_custom_call.1} parent=1 // pred_region
      %s37 = ssub.s32 512, 512
      %38 = vsyncadd [#allocation6], %s37
      %s39 = sshll.u32 [#allocation7], 4
      %s40 = int_to_ptr.vmem [resolvable:$true] %s39
      %45 = dma.hbm_to_vmem [thread:$0]  %s2, 512, %s40, [#allocation6], 64, 64, 4
    $region13: #{tpu_custom_call.1} parent=1 // pred_fallthru
      _
    // Predicated region
    $region14: #{tpu_custom_call.1} parent=1 // pred_check
      _
    $region15: #{tpu_custom_call.1} parent=1 // pred_check_branch
      %47 = sbr.rel (0) target = $region17
    $region16: #{tpu_custom_call.1} parent=1 // pred_region
      _
    $region17: #{tpu_custom_call.1} parent=1 // pred_fallthru
      _
    // Predicated region
    $region18: #{tpu_custom_call.1} parent=1 // pred_check
      _
    $region19: #{tpu_custom_call.1} parent=1 // pred_check_branch
      %49 = sbr.rel (0) target = $region21
    $region20: #{tpu_custom_call.1} parent=1 // pred_region
      %50 = dma.done [#allocation3], 64
    $region21: #{tpu_custom_call.1} parent=1 // pred_fallthru
      _
    // Predicated region
    $region22: #{tpu_custom_call.1} parent=1 // pred_check
      _
    $region23: #{tpu_custom_call.1} parent=1 // pred_check_branch
      %52 = sbr.rel (0) target = $region25
    $region24: #{tpu_custom_call.1} parent=1 // pred_region
      %53 = dma.done [#allocation6], 512
    $region25: #{tpu_custom_call.1} parent=1 // pred_fallthru
      _
    // Predicated region
    $region26: #{tpu_custom_call.1} parent=1 // pred_check
      _
    $region27: #{tpu_custom_call.1} parent=1 // pred_check_branch
      %55 = sbr.rel (0) target = $region29
    $region28: #{tpu_custom_call.1} parent=1 // pred_region
      %56 = dma.done [#allocation6], 512
    $region29: #{tpu_custom_call.1} parent=1 // pred_fallthru
      _
    %v58 = vld [vmem:[#allocation2] sm:$0xf]
    %v59 = vld [vmem:[#allocation5] sm:$0xff]
    %v60 = vld [vmem:[#allocation5 + $0x8] sm:$0xff]
    %v61 = vld [vmem:[#allocation5 + $0x10] sm:$0xff]
    %v62 = vld [vmem:[#allocation5 + $0x18] sm:$0xff]
    %vm63 = vcmask 523264
    %v64 = vsel %vm63, %v59, 0.0
    %v65 = vrot.slane %v64, 4
    %v66 = vadd.f32 %v64, %v65
    %v67 = vrot.slane %v66, 2
    %v68 = vadd.f32 %v66, %v67
    %v69 = vrot.slane %v68, 1
    %v70 = vadd.f32 %v68, %v69
    %v71 = vsel %vm63, %v60, 0.0
    %v72 = vrot.slane %v71, 4
    %v73 = vadd.f32 %v71, %v72
    %v74 = vrot.slane %v73, 2
    %v75 = vadd.f32 %v73, %v74
    %v76 = vrot.slane %v75, 1
    %v77 = vadd.f32 %v75, %v76
    %v78 = vsel %vm63, %v61, 0.0
    %v79 = vrot.slane %v78, 4
    %v80 = vadd.f32 %v78, %v79
    %v81 = vrot.slane %v80, 2
    %v82 = vadd.f32 %v80, %v81
    %v83 = vrot.slane %v82, 1
    %v84 = vadd.f32 %v82, %v83
    %v85 = vsel %vm63, %v62, 0.0
    %v86 = vrot.slane %v85, 4
    %v87 = vadd.f32 %v85, %v86
    %v88 = vrot.slane %v87, 2
    %v89 = vadd.f32 %v87, %v88
    %v90 = vrot.slane %v89, 1
    %v91 = vadd.f32 %v89, %v90
    %v92 = vrcp.pop 8.0
    %v93 = vmul.f32 %v70, %v92
    %v94 = vmul.f32 %v77, %v92
    %v95 = vmul.f32 %v84, %v92
    %v96 = vmul.f32 %v91, %v92
    %v97 = vpack.c.bf16 %v93, %v93
    %v98 = vpack.c.bf16 %v94, %v94
    %v99 = vpack.c.bf16 %v95, %v95
    %v100 = vpack.c.bf16 %v96, %v96
    %v101 = vld [vmem:[#allocation7] sm:$0xf]
    %v102 = vld [vmem:[#allocation7 + $0x4] sm:$0xf]
    %v103 = vld [vmem:[#allocation7 + $0x8] sm:$0xf]
    %v104 = vld [vmem:[#allocation7 + $0xc] sm:$0xf]
    %v105 = vld [vmem:[#allocation7 + $0x10] sm:$0xf]
    %v106 = vld [vmem:[#allocation7 + $0x14] sm:$0xf]
    %v107 = vld [vmem:[#allocation7 + $0x18] sm:$0xf]
    %v108 = vld [vmem:[#allocation7 + $0x1c] sm:$0xf]
    %v109 = vld [vmem:[%s3] sm:$0x1]
    %v111 = vlaneseq
    %v112 = vshrl.u32 %v111, 7
    %v113 = vsub.s32 0, %v112
    %v114 = vrot.slane %v109, %v113
    %v120 = vunpack.c.l.b16 %v97
    %v121 = vunpack.c.l.b16 %v98
    %v122 = vunpack.c.l.b16 %v99
    %v123 = vunpack.c.l.b16 %v100
    %vm124 = vcmask 1041409
    %v125 = vsel %vm124, %v121, %v120
    %vm126 = vcmask 1042434
    %v127 = vsel %vm126, %v122, %v125
    %vm128 = vcmask 1043459
    %v129 = vsel %vm128, %v123, %v127
    %v130 = vpack.c.b16 %v129, %v129
    %v139 = vunpack.c.l.b16 %v101
    %v140 = vunpack.c.l.b16 %v102
    %v141 = vunpack.c.l.b16 %v103
    %v142 = vunpack.c.l.b16 %v104
    %v143 = vunpack.c.l.b16 %v105
    %v144 = vunpack.c.l.b16 %v106
    %v145 = vunpack.c.l.b16 %v107
    %v146 = vunpack.c.l.b16 %v108
    %v147 = vpack.c.b16 %v140, %v139
    %v148 = vpack.c.b16 %v142, %v141
    %v149 = vpack.c.b16 %v144, %v143
    %v150 = vpack.c.b16 %v146, %v145
    %v156 = vsel %vm63, %v130, 0
    %158 = vmatprep.subr.bf16.mxu0 0
    %159 = vmatpush1.bf16.msra.mxu0 %v147
    %160 = vmatprep.subr.bf16.mxu0 0
    %161 = vmatpush1.bf16.msra.mxu0 %v148
    %162 = vmatprep.subr.bf16.mxu0 0
    %163 = vmatpush1.bf16.msra.mxu0 %v149
    %164 = vmatprep.subr.bf16.mxu0 0
    %165 = vmatpush1.bf16.msra.mxu0 %v150
    %166 = vmatprep.subr.bf16.mxu0 0
    %167 = vmatpush1.bf16.msra.mxu0 0
    %168 = vmatprep.subr.bf16.mxu0 0
    %169 = vmatpush1.bf16.msra.mxu0 0
    %170 = vmatprep.subr.bf16.mxu0 0
    %171 = vmatpush1.bf16.msra.mxu0 0
    %172 = vmatprep.subr.bf16.mxu0 0
    %173 = vmatpush1.bf16.msra.mxu0 0
    %174 = vmatprep.subr.bf16.mxu0 0
    %175 = vmatpush1.bf16.msra.mxu0 0
    %176 = vmatprep.subr.bf16.mxu0 0
    %177 = vmatpush1.bf16.msra.mxu0 0
    %178 = vmatprep.subr.bf16.mxu0 0
    %179 = vmatpush1.bf16.msra.mxu0 0
    %180 = vmatprep.subr.bf16.mxu0 0
    %181 = vmatpush1.bf16.msra.mxu0 0
    %182 = vmatprep.subr.bf16.mxu0 0
    %183 = vmatpush1.bf16.msra.mxu0 0
    %184 = vmatprep.subr.bf16.mxu0 0
    %185 = vmatpush1.bf16.msra.mxu0 0
    %186 = vmatprep.subr.bf16.mxu0 0
    %187 = vmatpush1.bf16.msra.mxu0 0
    %188 = vmatprep.subr.bf16.mxu0 0
    %189 = vmatpush1.bf16.msra.mxu0 0
    %190 = vmatprep.mubr.bf16.mxu0 0
    %191 = vmatmul.mubr.bf16.gmra.mrb[0].mxu0 %v156
    %v192 = vpop.f32.mrb[0].mxu0
    %v193 = vadd.f32 %v114, %v192
    %v194 = vpop.f32.mrb[0].mxu0
    %v195 = vpop.f32.mrb[0].mxu0
    %v196 = vpop.f32.mrb[0].mxu0
    %197 = vdwg.mxu0
    %199 = vrot.lane.b32.xlu0 %v193, 64
    %v200 = vpop.permute.xlu0 %199
    %v202 = vsel %vm63, %v58, %v200
    %v203 = vlaneseq
    %v204 = vand.u32 %v203, 127
    %vm205 = vcmp.lt.s32.totalorder %v204, 64
    %v206 = vmul.f32 %v202, %v202
    %vm207 = vcmask 1043456
    %v208 = vsel %vm207, %v206, 0.0
    %209 = vadd.xlane.f32.xlu0 %v208
    %v210 = vpop.xlane.xlu0 %209
    %v211 = vsel %vm205, %v206, 0.0
    %v212 = vsel %vm207, %v211, 0.0
    %213 = vadd.xlane.f32.xlu0 %v212
    %v214 = vpop.xlane.xlu0 %213
    %v215 = vrsqrt.pop %v214
    %v216 = vsub.f32 %v210, %v214
    %v217 = vrsqrt.pop %v216
    %v218 = vsel %vm205, %v215, %v217
    %v219 = vmul.f32 %v202, %v218
    %220 = vst [vmem:[#allocation8] sm:$0xf] %v219
    // Predicated region
    $region30: #{tpu_custom_call.1} parent=1 // pred_check
      _
    $region31: #{tpu_custom_call.1} parent=1 // pred_check_branch
      %222 = sbr.rel (0) target = $region33
    $region32: #{tpu_custom_call.1} parent=1 // pred_region
      %s224 = ssub.s32 64, 64
      %225 = vsyncadd [#allocation4], %s224
      %s227 = sshll.u32 [#allocation8], 4
      %s228 = int_to_ptr.vmem [resolvable:$true] %s227
      %230 = dma.vmem_to_hbm [thread:$0]  %s228, 64, %s4, [#allocation4]
    $region33: #{tpu_custom_call.1} parent=1 // pred_fallthru
      _
    // Predicated region
    $region34: #{tpu_custom_call.1} parent=1 // pred_check
      _
    $region35: #{tpu_custom_call.1} parent=1 // pred_check_branch
      %232 = sbr.rel (0) target = $region37
    $region36: #{tpu_custom_call.1} parent=1 // pred_region
      %233 = dma.done [#allocation4], 64
    $region37: #{tpu_custom_call.1} parent=1 // pred_fallthru
      _
    %234 = vsyncpa [#allocation3], 1
    %235 = vsyncpa [#allocation6], 1
    %236 = vsyncpa [#allocation4], 1

</llo_original>
